<compile_context>
chip_gen: v7x
topology: tpu7x:2x2x1
jax: 0.10.0
libtpu: 0.0.40
codegen_flags: <defaults>
</compile_context>

<pallas_src>
import jax
import jax.numpy as jnp
from jax.experimental import pallas as pl
from jax.experimental.pallas import tpu as pltpu

INPUT_DIM = 64
OUTPUT_DIM = 64
HIDDEN = 64
NB_BLOCKS = 4

D_PAD = 128  # lane-padded feature width (lane axis = 128)


def residual_fc_kernel(x_ref, w_in_ref, b_in_ref, w_blk_ref, b_blk_ref,
                       w_out_ref, b_out_ref, o_ref):
    # x_ref: (tile_b, D_PAD) bf16 ; weights bf16 ; biases f32.
    # Input projection + ReLU (f32 accumulation on the MXU).
    h = jnp.dot(x_ref[...], w_in_ref[...],
                preferred_element_type=jnp.float32) + b_in_ref[...]
    h = jnp.maximum(h, 0.0)                       # f32 (tile_b, D_PAD)

    # Residual blocks: h = h + relu(h @ W_l + b_l). Small static loop, unrolled.
    for l in range(NB_BLOCKS):
        y = jnp.dot(h.astype(jnp.bfloat16), w_blk_ref[l],
                    preferred_element_type=jnp.float32) + b_blk_ref[l]
        h = h + jnp.maximum(y, 0.0)

    # Output projection (no activation). Lane-dense 128-wide store.
    out = jnp.dot(h.astype(jnp.bfloat16), w_out_ref[...],
                  preferred_element_type=jnp.float32) + b_out_ref[...]
    o_ref[...] = out.astype(o_ref.dtype)


def _pick_tile_b(B, cap=1024):
    """Largest multiple-of-8 divisor of B that is <= cap, preferring >= 2 grid steps."""
    cand = min(B, cap)
    if B >= 16 and cand > B // 2:   # guarantee >= 2 grid steps (v7x: both TCs busy)
        cand = B // 2
    cand = max(8, (cand // 8) * 8)
    while cand > 8 and B % cand != 0:
        cand -= 8
    return cand


def residual_fc_forward(x, params, *, tile_b=None):
    """x: (B, INPUT_DIM) float32. params: padded/bf16 params from pad_params()."""
    B, D = x.shape
    assert D == INPUT_DIM
    assert B % 8 == 0, "batch must be a multiple of 8 (sublane rule)"

    if tile_b is None:
        tile_b = _pick_tile_b(B)
    assert tile_b % 8 == 0, "tile_b must be a multiple of 8"
    assert B % tile_b == 0, "tile_b must divide B"

    grid = (B // tile_b,)

    # Lane-pad the input to 128 and feed the MXU bf16 (halves HBM traffic for x).
    x_p = jnp.pad(x.astype(jnp.bfloat16), ((0, 0), (0, D_PAD - D)))

    # Advisory cost hint for the XLA scheduler.
    flops = 2 * B * D_PAD * D_PAD * (NB_BLOCKS + 2)
    bytes_accessed = (B * D_PAD * 2                       # x (bf16)
                      + B * D_PAD * 4                     # out (f32)
                      + (NB_BLOCKS + 2) * D_PAD * D_PAD * 2   # weights (bf16)
                      + (NB_BLOCKS + 2) * D_PAD * 4)          # biases (f32)
    cost = pl.CostEstimate(flops=flops, transcendentals=0,
                           bytes_accessed=bytes_accessed)

    out_padded = pl.pallas_call(
        residual_fc_kernel,
        out_shape=jax.ShapeDtypeStruct((B, D_PAD), jnp.float32),
        grid_spec=pl.GridSpec(
            grid=grid,
            in_specs=[
                # activations: streamed/tiled over batch
                pl.BlockSpec((tile_b, D_PAD), lambda i: (i, 0)),
                # weights / biases: resident, same block every grid step
                pl.BlockSpec((D_PAD, D_PAD), lambda i: (0, 0)),
                pl.BlockSpec((1, D_PAD), lambda i: (0, 0)),
                pl.BlockSpec((NB_BLOCKS, D_PAD, D_PAD), lambda i: (0, 0, 0)),
                pl.BlockSpec((NB_BLOCKS, 1, D_PAD), lambda i: (0, 0, 0)),
                pl.BlockSpec((D_PAD, D_PAD), lambda i: (0, 0)),
                pl.BlockSpec((1, D_PAD), lambda i: (0, 0)),
            ],
            out_specs=pl.BlockSpec((tile_b, D_PAD), lambda i: (i, 0)),
        ),
        compiler_params=pltpu.CompilerParams(
            dimension_semantics=("parallel",)),
        cost_estimate=cost,
    )(x_p, params["w_in"], params["b_in"], params["w_blk"], params["b_blk"],
      params["w_out"], params["b_out"])

    return out_padded[:, :OUTPUT_DIM]


def init_params(key):
    """Deterministic synthetic f32 weights, already transposed to (in, out)."""
    ks = jax.random.split(key, 6)
    scale = 0.05
    w_in = scale * jax.random.normal(ks[0], (INPUT_DIM, HIDDEN), jnp.float32)
    b_in = scale * jax.random.normal(ks[1], (1, HIDDEN), jnp.float32)
    w_blk = scale * jax.random.normal(ks[2], (NB_BLOCKS, HIDDEN, HIDDEN), jnp.float32)
    b_blk = scale * jax.random.normal(ks[3], (NB_BLOCKS, HIDDEN), jnp.float32)
    w_out = scale * jax.random.normal(ks[4], (HIDDEN, OUTPUT_DIM), jnp.float32)
    b_out = scale * jax.random.normal(ks[5], (1, OUTPUT_DIM), jnp.float32)
    return dict(w_in=w_in, b_in=b_in, w_blk=w_blk, b_blk=b_blk,
                w_out=w_out, b_out=b_out)


def pad_params(p):
    """Zero-pad feature dims to 128 lanes; weights -> bf16, biases -> f32."""
    pad2 = lambda a: jnp.pad(a, ((0, D_PAD - a.shape[0]), (0, D_PAD - a.shape[1])))
    w_in = pad2(p["w_in"]).astype(jnp.bfloat16)
    w_out = pad2(p["w_out"]).astype(jnp.bfloat16)
    w_blk = jnp.pad(p["w_blk"],
                    ((0, 0), (0, D_PAD - HIDDEN), (0, D_PAD - HIDDEN))
                    ).astype(jnp.bfloat16)
    b_in = jnp.pad(p["b_in"], ((0, 0), (0, D_PAD - HIDDEN))).astype(jnp.float32)
    b_out = jnp.pad(p["b_out"], ((0, 0), (0, D_PAD - OUTPUT_DIM))).astype(jnp.float32)
    b_blk = jnp.pad(p["b_blk"][:, None, :],
                    ((0, 0), (0, 0), (0, D_PAD - HIDDEN))).astype(jnp.float32)
    return dict(w_in=w_in, b_in=b_in, w_blk=w_blk, b_blk=b_blk,
                w_out=w_out, b_out=b_out)


def reference_forward(x, p):
    """Pure-JAX f32 reference on the unpadded parameters."""
    h = jnp.maximum(x @ p["w_in"] + p["b_in"], 0.0)
    for l in range(NB_BLOCKS):
        h = h + jnp.maximum(h @ p["w_blk"][l] + p["b_blk"][l][None, :], 0.0)
    return h @ p["w_out"] + p["b_out"]


if __name__ == "__main__":
    key = jax.random.PRNGKey(0)
    kx, kp = jax.random.split(key)
    B = 8
    x = jax.random.normal(kx, (B, INPUT_DIM), jnp.float32)
    params_f32 = init_params(kp)
    params = pad_params(params_f32)

    out = residual_fc_forward(x, params)
    out = jax.block_until_ready(out)

    ref = reference_forward(x, params_f32)
    assert out.shape == (B, OUTPUT_DIM)
    # bf16 matmul inputs (f32 accumulation) -> loosened tolerance vs f32 reference.
    assert jnp.allclose(out, ref, atol=3e-2, rtol=3e-2), "mismatch vs JAX reference"
    print("KERNEL_OK")
</pallas_src>

<mosaic_0001>
module attributes {stable_mosaic.version = 11 : i64} {
  func.func @residual_fc_kernel(%arg0: i32, %arg1: memref<8x128xbf16, #tpu.memory_space<vmem>>, %arg2: memref<128x128xbf16, #tpu.memory_space<vmem>>, %arg3: memref<1x128xf32, #tpu.memory_space<vmem>>, %arg4: memref<4x128x128xbf16, #tpu.memory_space<vmem>>, %arg5: memref<4x1x128xf32, #tpu.memory_space<vmem>>, %arg6: memref<128x128xbf16, #tpu.memory_space<vmem>>, %arg7: memref<1x128xf32, #tpu.memory_space<vmem>>, %arg8: memref<8x128xf32, #tpu.memory_space<vmem>>) attributes {dimension_semantics = [#tpu.dimension_semantics<parallel>], iteration_bounds = array<i64: 1>, scalar_prefetch = 0 : i64, scratch_operands = 0 : i64, tpu.core_type = #tpu.core_type<tc>, window_params = [{transform_indices = @transform_0, window_bounds = array<i64: 8, 128>}, {pipeline_mode = #tpu.pipeline_mode<synchronous>, transform_indices = @transform_1, window_bounds = array<i64: 128, 128>}, {pipeline_mode = #tpu.pipeline_mode<synchronous>, transform_indices = @transform_2, window_bounds = array<i64: 1, 128>}, {pipeline_mode = #tpu.pipeline_mode<synchronous>, transform_indices = @transform_3, window_bounds = array<i64: 4, 128, 128>}, {pipeline_mode = #tpu.pipeline_mode<synchronous>, transform_indices = @transform_4, window_bounds = array<i64: 4, 1, 128>}, {pipeline_mode = #tpu.pipeline_mode<synchronous>, transform_indices = @transform_5, window_bounds = array<i64: 128, 128>}, {pipeline_mode = #tpu.pipeline_mode<synchronous>, transform_indices = @transform_6, window_bounds = array<i64: 1, 128>}, {transform_indices = @transform_7, window_bounds = array<i64: 8, 128>}]} {
    %c0 = arith.constant 0 : index
    %c0_0 = arith.constant 0 : index
    %0 = vector.load %arg1[%c0, %c0_0] : memref<8x128xbf16, #tpu.memory_space<vmem>>, vector<8x128xbf16>
    %c0_1 = arith.constant 0 : index
    %c0_2 = arith.constant 0 : index
    %1 = vector.load %arg2[%c0_1, %c0_2] : memref<128x128xbf16, #tpu.memory_space<vmem>>, vector<128x128xbf16>
    %cst = arith.constant dense<0.000000e+00> : vector<8x128xf32>
    %2 = tpu.matmul %0, %1, %cst {dimension_numbers = #tpu.dot_dimension_numbers<[1], [0], [0], [1], [0, 0, 1, 1], [], []>} : vector<8x128xbf16>, vector<128x128xbf16>, vector<8x128xf32> -> vector<8x128xf32>
    %c0_3 = arith.constant 0 : index
    %c0_4 = arith.constant 0 : index
    %3 = vector.load %arg3[%c0_3, %c0_4] : memref<1x128xf32, #tpu.memory_space<vmem>>, vector<1x128xf32>
    %4 = vector.broadcast %3 : vector<1x128xf32> to vector<8x128xf32>
    %5 = arith.addf %2, %4 : vector<8x128xf32>
    %cst_5 = arith.constant 0.000000e+00 : f32
    %6 = vector.broadcast %cst_5 : f32 to vector<8x128xf32>
    %7 = arith.maximumf %5, %6 : vector<8x128xf32>
    %8 = arith.truncf %7 : vector<8x128xf32> to vector<8x128xbf16>
    %c0_6 = arith.constant 0 : index
    %c0_7 = arith.constant 0 : index
    %c0_8 = arith.constant 0 : index
    %9 = vector.load %arg4[%c0_6, %c0_7, %c0_8] : memref<4x128x128xbf16, #tpu.memory_space<vmem>>, vector<1x128x128xbf16>
    %10 = vector.shape_cast %9 : vector<1x128x128xbf16> to vector<128x128xbf16>
    %cst_9 = arith.constant dense<0.000000e+00> : vector<8x128xf32>
    %11 = tpu.matmul %8, %10, %cst_9 {dimension_numbers = #tpu.dot_dimension_numbers<[1], [0], [0], [1], [0, 0, 1, 1], [], []>} : vector<8x128xbf16>, vector<128x128xbf16>, vector<8x128xf32> -> vector<8x128xf32>
    %c0_10 = arith.constant 0 : index
    %c0_11 = arith.constant 0 : index
    %c0_12 = arith.constant 0 : index
    %12 = vector.load %arg5[%c0_10, %c0_11, %c0_12] : memref<4x1x128xf32, #tpu.memory_space<vmem>>, vector<1x1x128xf32>
    %13 = vector.shape_cast %12 : vector<1x1x128xf32> to vector<1x128xf32>
    %14 = vector.broadcast %13 : vector<1x128xf32> to vector<8x128xf32>
    %15 = arith.addf %11, %14 : vector<8x128xf32>
    %cst_13 = arith.constant 0.000000e+00 : f32
    %16 = vector.broadcast %cst_13 : f32 to vector<8x128xf32>
    %17 = arith.maximumf %15, %16 : vector<8x128xf32>
    %18 = arith.addf %7, %17 : vector<8x128xf32>
    %19 = arith.truncf %18 : vector<8x128xf32> to vector<8x128xbf16>
    %c1 = arith.constant 1 : index
    %c0_14 = arith.constant 0 : index
    %c0_15 = arith.constant 0 : index
    %20 = vector.load %arg4[%c1, %c0_14, %c0_15] : memref<4x128x128xbf16, #tpu.memory_space<vmem>>, vector<1x128x128xbf16>
    %21 = vector.shape_cast %20 : vector<1x128x128xbf16> to vector<128x128xbf16>
    %cst_16 = arith.constant dense<0.000000e+00> : vector<8x128xf32>
    %22 = tpu.matmul %19, %21, %cst_16 {dimension_numbers = #tpu.dot_dimension_numbers<[1], [0], [0], [1], [0, 0, 1, 1], [], []>} : vector<8x128xbf16>, vector<128x128xbf16>, vector<8x128xf32> -> vector<8x128xf32>
    %c1_17 = arith.constant 1 : index
    %c0_18 = arith.constant 0 : index
    %c0_19 = arith.constant 0 : index
    %23 = vector.load %arg5[%c1_17, %c0_18, %c0_19] : memref<4x1x128xf32, #tpu.memory_space<vmem>>, vector<1x1x128xf32>
    %24 = vector.shape_cast %23 : vector<1x1x128xf32> to vector<1x128xf32>
    %25 = vector.broadcast %24 : vector<1x128xf32> to vector<8x128xf32>
    %26 = arith.addf %22, %25 : vector<8x128xf32>
    %cst_20 = arith.constant 0.000000e+00 : f32
    %27 = vector.broadcast %cst_20 : f32 to vector<8x128xf32>
    %28 = arith.maximumf %26, %27 : vector<8x128xf32>
    %29 = arith.addf %18, %28 : vector<8x128xf32>
    %30 = arith.truncf %29 : vector<8x128xf32> to vector<8x128xbf16>
    %c2 = arith.constant 2 : index
    %c0_21 = arith.constant 0 : index
    %c0_22 = arith.constant 0 : index
    %31 = vector.load %arg4[%c2, %c0_21, %c0_22] : memref<4x128x128xbf16, #tpu.memory_space<vmem>>, vector<1x128x128xbf16>
    %32 = vector.shape_cast %31 : vector<1x128x128xbf16> to vector<128x128xbf16>
    %cst_23 = arith.constant dense<0.000000e+00> : vector<8x128xf32>
    %33 = tpu.matmul %30, %32, %cst_23 {dimension_numbers = #tpu.dot_dimension_numbers<[1], [0], [0], [1], [0, 0, 1, 1], [], []>} : vector<8x128xbf16>, vector<128x128xbf16>, vector<8x128xf32> -> vector<8x128xf32>
    %c2_24 = arith.constant 2 : index
    %c0_25 = arith.constant 0 : index
    %c0_26 = arith.constant 0 : index
    %34 = vector.load %arg5[%c2_24, %c0_25, %c0_26] : memref<4x1x128xf32, #tpu.memory_space<vmem>>, vector<1x1x128xf32>
    %35 = vector.shape_cast %34 : vector<1x1x128xf32> to vector<1x128xf32>
    %36 = vector.broadcast %35 : vector<1x128xf32> to vector<8x128xf32>
    %37 = arith.addf %33, %36 : vector<8x128xf32>
    %cst_27 = arith.constant 0.000000e+00 : f32
    %38 = vector.broadcast %cst_27 : f32 to vector<8x128xf32>
    %39 = arith.maximumf %37, %38 : vector<8x128xf32>
    %40 = arith.addf %29, %39 : vector<8x128xf32>
    %41 = arith.truncf %40 : vector<8x128xf32> to vector<8x128xbf16>
    %c3 = arith.constant 3 : index
    %c0_28 = arith.constant 0 : index
    %c0_29 = arith.constant 0 : index
    %42 = vector.load %arg4[%c3, %c0_28, %c0_29] : memref<4x128x128xbf16, #tpu.memory_space<vmem>>, vector<1x128x128xbf16>
    %43 = vector.shape_cast %42 : vector<1x128x128xbf16> to vector<128x128xbf16>
    %cst_30 = arith.constant dense<0.000000e+00> : vector<8x128xf32>
    %44 = tpu.matmul %41, %43, %cst_30 {dimension_numbers = #tpu.dot_dimension_numbers<[1], [0], [0], [1], [0, 0, 1, 1], [], []>} : vector<8x128xbf16>, vector<128x128xbf16>, vector<8x128xf32> -> vector<8x128xf32>
    %c3_31 = arith.constant 3 : index
    %c0_32 = arith.constant 0 : index
    %c0_33 = arith.constant 0 : index
    %45 = vector.load %arg5[%c3_31, %c0_32, %c0_33] : memref<4x1x128xf32, #tpu.memory_space<vmem>>, vector<1x1x128xf32>
    %46 = vector.shape_cast %45 : vector<1x1x128xf32> to vector<1x128xf32>
    %47 = vector.broadcast %46 : vector<1x128xf32> to vector<8x128xf32>
    %48 = arith.addf %44, %47 : vector<8x128xf32>
    %cst_34 = arith.constant 0.000000e+00 : f32
    %49 = vector.broadcast %cst_34 : f32 to vector<8x128xf32>
    %50 = arith.maximumf %48, %49 : vector<8x128xf32>
    %51 = arith.addf %40, %50 : vector<8x128xf32>
    %52 = arith.truncf %51 : vector<8x128xf32> to vector<8x128xbf16>
    %c0_35 = arith.constant 0 : index
    %c0_36 = arith.constant 0 : index
    %53 = vector.load %arg6[%c0_35, %c0_36] : memref<128x128xbf16, #tpu.memory_space<vmem>>, vector<128x128xbf16>
    %cst_37 = arith.constant dense<0.000000e+00> : vector<8x128xf32>
    %54 = tpu.matmul %52, %53, %cst_37 {dimension_numbers = #tpu.dot_dimension_numbers<[1], [0], [0], [1], [0, 0, 1, 1], [], []>} : vector<8x128xbf16>, vector<128x128xbf16>, vector<8x128xf32> -> vector<8x128xf32>
    %c0_38 = arith.constant 0 : index
    %c0_39 = arith.constant 0 : index
    %55 = vector.load %arg7[%c0_38, %c0_39] : memref<1x128xf32, #tpu.memory_space<vmem>>, vector<1x128xf32>
    %56 = vector.broadcast %55 : vector<1x128xf32> to vector<8x128xf32>
    %57 = arith.addf %54, %56 : vector<8x128xf32>
    %c0_40 = arith.constant 0 : index
    %c0_41 = arith.constant 0 : index
    %58 = vector.load %arg8[%c0_40, %c0_41] : memref<8x128xf32, #tpu.memory_space<vmem>>, vector<8x128xf32>
    tpu.vector_store %arg8[%c0_40, %c0_41], %57 {strides = array<i32>} : memref<8x128xf32, #tpu.memory_space<vmem>>, vector<8x128xf32>,
    return
  }
  func.func @transform_0(%arg0: i32) -> (i32, i32) {
    %c0_i32 = arith.constant 0 : i32
    %c0_i32_0 = arith.constant 0 : i32
    return %arg0, %c0_i32 : i32, i32
  }
  func.func @transform_1(%arg0: i32) -> (i32, i32) {
    %c0_i32 = arith.constant 0 : i32
    %c0_i32_0 = arith.constant 0 : i32
    %c0_i32_1 = arith.constant 0 : i32
    return %c0_i32, %c0_i32_0 : i32, i32
  }
  func.func @transform_2(%arg0: i32) -> (i32, i32) {
    %c0_i32 = arith.constant 0 : i32
    %c0_i32_0 = arith.constant 0 : i32
    %c0_i32_1 = arith.constant 0 : i32
    return %c0_i32, %c0_i32_0 : i32, i32
  }
  func.func @transform_3(%arg0: i32) -> (i32, i32, i32) {
    %c0_i32 = arith.constant 0 : i32
    %c0_i32_0 = arith.constant 0 : i32
    %c0_i32_1 = arith.constant 0 : i32
    %c0_i32_2 = arith.constant 0 : i32
    return %c0_i32, %c0_i32_0, %c0_i32_1 : i32, i32, i32
  }
  func.func @transform_4(%arg0: i32) -> (i32, i32, i32) {
    %c0_i32 = arith.constant 0 : i32
    %c0_i32_0 = arith.constant 0 : i32
    %c0_i32_1 = arith.constant 0 : i32
    %c0_i32_2 = arith.constant 0 : i32
    return %c0_i32, %c0_i32_0, %c0_i32_1 : i32, i32, i32
  }
  func.func @transform_5(%arg0: i32) -> (i32, i32) {
    %c0_i32 = arith.constant 0 : i32
    %c0_i32_0 = arith.constant 0 : i32
    %c0_i32_1 = arith.constant 0 : i32
    return %c0_i32, %c0_i32_0 : i32, i32
  }
  func.func @transform_6(%arg0: i32) -> (i32, i32) {
    %c0_i32 = arith.constant 0 : i32
    %c0_i32_0 = arith.constant 0 : i32
    %c0_i32_1 = arith.constant 0 : i32
    return %c0_i32, %c0_i32_0 : i32, i32
  }
  func.func @transform_7(%arg0: i32) -> (i32, i32) {
    %c0_i32 = arith.constant 0 : i32
    %c0_i32_0 = arith.constant 0 : i32
    return %arg0, %c0_i32 : i32, i32
  }
}

</mosaic_0001>

<llo_original>
// kernel: tpu_custom_call.1
$region0: #{tpu_custom_call.1}
  #allocation0 [shape = 'u32[]', space=smem, size = 0x4, offset = 0x4, fixed_abs, tag = 'smem constant byte address 0x4 - core index']
  #allocation1 [shape = 'u32[144,128]{1,0:T(1,128)}', space=vmem, size = 0x12000, scoped, tag = 'internal scratch']
  %s0 = inlined_call_operand.hbm [shape: bf16[8,128], index: 0, kind: input, shape index: {}]
  %s1 = inlined_call_operand.hbm [shape: bf16[128,128], index: 1, kind: input, shape index: {}]
  %s2 = inlined_call_operand.vmem [shape: f32[1,128], index: 2, kind: input, shape index: {}]
  %s3 = inlined_call_operand.hbm [shape: bf16[4,128,128], index: 3, kind: input, shape index: {}]
  %s4 = inlined_call_operand.vmem [shape: f32[4,1,128], index: 4, kind: input, shape index: {}]
  %s5 = inlined_call_operand.hbm [shape: bf16[128,128], index: 5, kind: input, shape index: {}]
  %s6 = inlined_call_operand.vmem [shape: f32[1,128], index: 6, kind: input, shape index: {}]
  %s7 = inlined_call_operand.hbm [shape: f32[8,128], index: 7, kind: output, shape index: {}]
  %s8 = sld [smem:[#allocation0]]
  $region54: #{tpu_custom_call.1} parent=0
    _
  %s10 = ssub.s32 1, %s8
  %s11 = scalar_select 0, %s10, %s8
  $region1: #{tpu_custom_call.1} parent=0
    #allocation2 [shape = 'u8[2048]{0}', space=vmem, size = 0x800, scoped, tag = 'input window, operand 0, single buffered']
    #allocation3 [shape = 's32[1]{0}', space=sflag, size = 0x4, scoped, tag = 'scoped memory for tpu_custom_call.1']
    #allocation4 [shape = 's32[1]{0}', space=sflag, size = 0x4, scoped, tag = 'scoped memory for tpu_custom_call.1']
    #allocation5 [shape = 'u8[32768]{0}', space=vmem, size = 0x8000, scoped, tag = 'input window, operand 1, single buffered']
    #allocation6 [shape = 's32[1]{0}', space=sflag, size = 0x4, scoped, tag = 'scoped memory for tpu_custom_call.1']
    #allocation7 [shape = 'u8[131072]{0}', space=vmem, size = 0x20000, scoped, tag = 'input window, operand 3, single buffered']
    #allocation8 [shape = 'u8[32768]{0}', space=vmem, size = 0x8000, scoped, tag = 'input window, operand 5, single buffered']
    #allocation9 [shape = 's32[1]{0}', space=sflag, size = 0x4, scoped, tag = 'scoped memory for tpu_custom_call.1']
    #allocation10 [shape = 'u8[4096]{0}', space=vmem, size = 0x1000, scoped, tag = 'output window, operand 0, single buffered']
    %12 = vsyncpa [#allocation3], 0
    %13 = vsyncpa [#allocation6], 0
    %14 = vsyncpa [#allocation9], 0
    %15 = vsyncpa [#allocation4], 0
    // Predicated region
    $region2: #{tpu_custom_call.1} parent=1 // pred_check
      _
    $region3: #{tpu_custom_call.1} parent=1 // pred_check_branch
      %17 = sbr.rel (0) target = $region5
    $region4: #{tpu_custom_call.1} parent=1 // pred_region
      %s19 = ssub.s32 64, 64
      %20 = vsyncadd [#allocation3], %s19
      %s22 = sshll.u32 [#allocation2], 4
      %s23 = int_to_ptr.vmem [resolvable:$true] %s22
      %25 = dma.hbm_to_vmem [thread:$0]  %s0, 64, %s23, [#allocation3]
    $region5: #{tpu_custom_call.1} parent=1 // pred_fallthru
      _
    // Predicated region
    $region6: #{tpu_custom_call.1} parent=1 // pred_check
      _
    $region7: #{tpu_custom_call.1} parent=1 // pred_check_branch
      %27 = sbr.rel (0) target = $region9
    $region8: #{tpu_custom_call.1} parent=1 // pred_region
      %s29 = ssub.s32 1024, 1024
      %30 = vsyncadd [#allocation6], %s29
      %s31 = sshll.u32 [#allocation5], 4
      %s32 = int_to_ptr.vmem [resolvable:$true] %s31
      %37 = dma.hbm_to_vmem [thread:$0]  %s1, 1024, %s32, [#allocation6], 64, 64, 4
    $region9: #{tpu_custom_call.1} parent=1 // pred_fallthru
      _
    // Predicated region
    $region10: #{tpu_custom_call.1} parent=1 // pred_check
      _
    $region11: #{tpu_custom_call.1} parent=1 // pred_check_branch
      %39 = sbr.rel (0) target = $region13
    $region12: #{tpu_custom_call.1} parent=1 // pred_region
      _
    $region13: #{tpu_custom_call.1} parent=1 // pred_fallthru
      _
    // Predicated region
    $region14: #{tpu_custom_call.1} parent=1 // pred_check
      _
    $region15: #{tpu_custom_call.1} parent=1 // pred_check_branch
      %41 = sbr.rel (0) target = $region17
    $region16: #{tpu_custom_call.1} parent=1 // pred_region
      %s43 = ssub.s32 4096, 4096
      %44 = vsyncadd [#allocation6], %s43
      %s45 = sshll.u32 [#allocation7], 4
      %s46 = int_to_ptr.vmem [resolvable:$true] %s45
      %51 = dma.hbm_to_vmem [thread:$0]  %s3, 4096, %s46, [#allocation6], 64, 64, 4
    $region17: #{tpu_custom_call.1} parent=1 // pred_fallthru
      _
    // Predicated region
    $region18: #{tpu_custom_call.1} parent=1 // pred_check
      _
    $region19: #{tpu_custom_call.1} parent=1 // pred_check_branch
      %53 = sbr.rel (0) target = $region21
    $region20: #{tpu_custom_call.1} parent=1 // pred_region
      _
    $region21: #{tpu_custom_call.1} parent=1 // pred_fallthru
      _
    // Predicated region
    $region22: #{tpu_custom_call.1} parent=1 // pred_check
      _
    $region23: #{tpu_custom_call.1} parent=1 // pred_check_branch
      %55 = sbr.rel (0) target = $region25
    $region24: #{tpu_custom_call.1} parent=1 // pred_region
      %s57 = ssub.s32 1024, 1024
      %58 = vsyncadd [#allocation9], %s57
      %s59 = sshll.u32 [#allocation8], 4
      %s60 = int_to_ptr.vmem [resolvable:$true] %s59
      %65 = dma.hbm_to_vmem [thread:$0]  %s5, 1024, %s60, [#allocation9], 64, 64, 4
    $region25: #{tpu_custom_call.1} parent=1 // pred_fallthru
      _
    // Predicated region
    $region26: #{tpu_custom_call.1} parent=1 // pred_check
      _
    $region27: #{tpu_custom_call.1} parent=1 // pred_check_branch
      %67 = sbr.rel (0) target = $region29
    $region28: #{tpu_custom_call.1} parent=1 // pred_region
      _
    $region29: #{tpu_custom_call.1} parent=1 // pred_fallthru
      _
    // Predicated region
    $region30: #{tpu_custom_call.1} parent=1 // pred_check
      _
    $region31: #{tpu_custom_call.1} parent=1 // pred_check_branch
      %69 = sbr.rel (0) target = $region33
    $region32: #{tpu_custom_call.1} parent=1 // pred_region
      %70 = dma.done [#allocation3], 64
    $region33: #{tpu_custom_call.1} parent=1 // pred_fallthru
      _
    // Predicated region
    $region34: #{tpu_custom_call.1} parent=1 // pred_check
      _
    $region35: #{tpu_custom_call.1} parent=1 // pred_check_branch
      %72 = sbr.rel (0) target = $region37
    $region36: #{tpu_custom_call.1} parent=1 // pred_region
      %73 = dma.done [#allocation6], 1024
    $region37: #{tpu_custom_call.1} parent=1 // pred_fallthru
      _
    // Predicated region
    $region38: #{tpu_custom_call.1} parent=1 // pred_check
      _
    $region39: #{tpu_custom_call.1} parent=1 // pred_check_branch
      %75 = sbr.rel (0) target = $region41
    $region40: #{tpu_custom_call.1} parent=1 // pred_region
      %76 = dma.done [#allocation6], 4096
    $region41: #{tpu_custom_call.1} parent=1 // pred_fallthru
      _
    // Predicated region
    $region42: #{tpu_custom_call.1} parent=1 // pred_check
      _
    $region43: #{tpu_custom_call.1} parent=1 // pred_check_branch
      %78 = sbr.rel (0) target = $region45
    $region44: #{tpu_custom_call.1} parent=1 // pred_region
      %79 = dma.done [#allocation9], 1024
    $region45: #{tpu_custom_call.1} parent=1 // pred_fallthru
      _
    %v81 = vld [vmem:[#allocation2] sm:$0xf]
    %v82 = vld [vmem:[#allocation5] sm:$0xf]
    %v83 = vld [vmem:[#allocation5 + $0x4] sm:$0xf]
    %v84 = vld [vmem:[#allocation5 + $0x8] sm:$0xf]
    %v85 = vld [vmem:[#allocation5 + $0xc] sm:$0xf]
    %v86 = vld [vmem:[#allocation5 + $0x10] sm:$0xf]
    %v87 = vld [vmem:[#allocation5 + $0x14] sm:$0xf]
    %v88 = vld [vmem:[#allocation5 + $0x18] sm:$0xf]
    %v89 = vld [vmem:[#allocation5 + $0x1c] sm:$0xf]
    %v90 = vld [vmem:[#allocation5 + $0x20] sm:$0xf]
    %v91 = vld [vmem:[#allocation5 + $0x24] sm:$0xf]
    %v92 = vld [vmem:[#allocation5 + $0x28] sm:$0xf]
    %v93 = vld [vmem:[#allocation5 + $0x2c] sm:$0xf]
    %v94 = vld [vmem:[#allocation5 + $0x30] sm:$0xf]
    %v95 = vld [vmem:[#allocation5 + $0x34] sm:$0xf]
    %v96 = vld [vmem:[#allocation5 + $0x38] sm:$0xf]
    %v97 = vld [vmem:[#allocation5 + $0x3c] sm:$0xf]
    %v98 = vld [vmem:[%s2] sm:$0x1]
    %v100 = vlaneseq
    %v101 = vshrl.u32 %v100, 7
    %v102 = vsub.s32 0, %v101
    %v103 = vrot.slane %v98, %v102
    %v121 = vunpack.c.l.b16 %v82
    %v122 = vunpack.c.l.b16 %v83
    %v123 = vunpack.c.l.b16 %v84
    %v124 = vunpack.c.l.b16 %v85
    %v125 = vunpack.c.l.b16 %v86
    %v126 = vunpack.c.l.b16 %v87
    %v127 = vunpack.c.l.b16 %v88
    %v128 = vunpack.c.l.b16 %v89
    %v129 = vunpack.c.l.b16 %v90
    %v130 = vunpack.c.l.b16 %v91
    %v131 = vunpack.c.l.b16 %v92
    %v132 = vunpack.c.l.b16 %v93
    %v133 = vunpack.c.l.b16 %v94
    %v134 = vunpack.c.l.b16 %v95
    %v135 = vunpack.c.l.b16 %v96
    %v136 = vunpack.c.l.b16 %v97
    %v137 = vpack.c.b16 %v122, %v121
    %v138 = vpack.c.b16 %v124, %v123
    %v139 = vpack.c.b16 %v126, %v125
    %v140 = vpack.c.b16 %v128, %v127
    %v141 = vpack.c.b16 %v130, %v129
    %v142 = vpack.c.b16 %v132, %v131
    %v143 = vpack.c.b16 %v134, %v133
    %v144 = vpack.c.b16 %v136, %v135
    %153 = vmatprep.subr.bf16.mxu0 0
    %154 = vmatpush1.bf16.msra.mxu0 %v137
    %155 = vmatprep.subr.bf16.mxu0 0
    %156 = vmatpush1.bf16.msra.mxu0 %v138
    %157 = vmatprep.subr.bf16.mxu0 0
    %158 = vmatpush1.bf16.msra.mxu0 %v139
    %159 = vmatprep.subr.bf16.mxu0 0
    %160 = vmatpush1.bf16.msra.mxu0 %v140
    %161 = vmatprep.subr.bf16.mxu0 0
    %162 = vmatpush1.bf16.msra.mxu0 %v141
    %163 = vmatprep.subr.bf16.mxu0 0
    %164 = vmatpush1.bf16.msra.mxu0 %v142
    %165 = vmatprep.subr.bf16.mxu0 0
    %166 = vmatpush1.bf16.msra.mxu0 %v143
    %167 = vmatprep.subr.bf16.mxu0 0
    %168 = vmatpush1.bf16.msra.mxu0 %v144
    %169 = vmatprep.subr.bf16.mxu0 0
    %170 = vmatpush1.bf16.msra.mxu0 0
    %171 = vmatprep.subr.bf16.mxu0 0
    %172 = vmatpush1.bf16.msra.mxu0 0
    %173 = vmatprep.subr.bf16.mxu0 0
    %174 = vmatpush1.bf16.msra.mxu0 0
    %175 = vmatprep.subr.bf16.mxu0 0
    %176 = vmatpush1.bf16.msra.mxu0 0
    %177 = vmatprep.subr.bf16.mxu0 0
    %178 = vmatpush1.bf16.msra.mxu0 0
    %179 = vmatprep.subr.bf16.mxu0 0
    %180 = vmatpush1.bf16.msra.mxu0 0
    %181 = vmatprep.subr.bf16.mxu0 0
    %182 = vmatpush1.bf16.msra.mxu0 0
    %183 = vmatprep.subr.bf16.mxu0 0
    %184 = vmatpush1.bf16.msra.mxu0 0
    %185 = vmatprep.mubr.bf16.mxu0 0
    %186 = vmatmul.mubr.bf16.gmra.mrb[0].mxu0 %v81
    %v187 = vpop.f32.mrb[0].mxu0
    %v188 = vadd.f32 %v103, %v187
    %v189 = vpop.f32.mrb[0].mxu0
    %v190 = vpop.f32.mrb[0].mxu0
    %v191 = vpop.f32.mrb[0].mxu0
    %192 = vdwg.mxu0
    %v193 = vmax.f32 %v188, 0.0
    %v194 = vpack.c.bf16 %v193, %v193
    %v195 = vld [vmem:[#allocation7] sm:$0xf]
    %v196 = vld [vmem:[#allocation7 + $0x4] sm:$0xf]
    %v197 = vld [vmem:[#allocation7 + $0x8] sm:$0xf]
    %v198 = vld [vmem:[#allocation7 + $0xc] sm:$0xf]
    %v199 = vld [vmem:[#allocation7 + $0x10] sm:$0xf]
    %v200 = vld [vmem:[#allocation7 + $0x14] sm:$0xf]
    %v201 = vld [vmem:[#allocation7 + $0x18] sm:$0xf]
    %v202 = vld [vmem:[#allocation7 + $0x1c] sm:$0xf]
    %v203 = vld [vmem:[#allocation7 + $0x20] sm:$0xf]
    %v204 = vld [vmem:[#allocation7 + $0x24] sm:$0xf]
    %v205 = vld [vmem:[#allocation7 + $0x28] sm:$0xf]
    %v206 = vld [vmem:[#allocation7 + $0x2c] sm:$0xf]
    %v207 = vld [vmem:[#allocation7 + $0x30] sm:$0xf]
    %v208 = vld [vmem:[#allocation7 + $0x34] sm:$0xf]
    %v209 = vld [vmem:[#allocation7 + $0x38] sm:$0xf]
    %v210 = vld [vmem:[#allocation7 + $0x3c] sm:$0xf]
    %v211 = vld [vmem:[%s4] sm:$0x1]
    %v213 = vlaneseq
    %v214 = vshrl.u32 %v213, 7
    %v215 = vsub.s32 0, %v214
    %v216 = vrot.slane %v211, %v215
    %v234 = vunpack.c.l.b16 %v195
    %v235 = vunpack.c.l.b16 %v196
    %v236 = vunpack.c.l.b16 %v197
    %v237 = vunpack.c.l.b16 %v198
    %v238 = vunpack.c.l.b16 %v199
    %v239 = vunpack.c.l.b16 %v200
    %v240 = vunpack.c.l.b16 %v201
    %v241 = vunpack.c.l.b16 %v202
    %v242 = vunpack.c.l.b16 %v203
    %v243 = vunpack.c.l.b16 %v204
    %v244 = vunpack.c.l.b16 %v205
    %v245 = vunpack.c.l.b16 %v206
    %v246 = vunpack.c.l.b16 %v207
    %v247 = vunpack.c.l.b16 %v208
    %v248 = vunpack.c.l.b16 %v209
    %v249 = vunpack.c.l.b16 %v210
    %v250 = vpack.c.b16 %v235, %v234
    %v251 = vpack.c.b16 %v237, %v236
    %v252 = vpack.c.b16 %v239, %v238
    %v253 = vpack.c.b16 %v241, %v240
    %v254 = vpack.c.b16 %v243, %v242
    %v255 = vpack.c.b16 %v245, %v244
    %v256 = vpack.c.b16 %v247, %v246
    %v257 = vpack.c.b16 %v249, %v248
    %266 = vmatprep.subr.bf16.mxu0 0
    %267 = vmatpush1.bf16.msra.mxu0 %v250
    %268 = vmatprep.subr.bf16.mxu0 0
    %269 = vmatpush1.bf16.msra.mxu0 %v251
    %270 = vmatprep.subr.bf16.mxu0 0
    %271 = vmatpush1.bf16.msra.mxu0 %v252
    %272 = vmatprep.subr.bf16.mxu0 0
    %273 = vmatpush1.bf16.msra.mxu0 %v253
    %274 = vmatprep.subr.bf16.mxu0 0
    %275 = vmatpush1.bf16.msra.mxu0 %v254
    %276 = vmatprep.subr.bf16.mxu0 0
    %277 = vmatpush1.bf16.msra.mxu0 %v255
    %278 = vmatprep.subr.bf16.mxu0 0
    %279 = vmatpush1.bf16.msra.mxu0 %v256
    %280 = vmatprep.subr.bf16.mxu0 0
    %281 = vmatpush1.bf16.msra.mxu0 %v257
    %282 = vmatprep.subr.bf16.mxu0 0
    %283 = vmatpush1.bf16.msra.mxu0 0
    %284 = vmatprep.subr.bf16.mxu0 0
    %285 = vmatpush1.bf16.msra.mxu0 0
    %286 = vmatprep.subr.bf16.mxu0 0
    %287 = vmatpush1.bf16.msra.mxu0 0
    %288 = vmatprep.subr.bf16.mxu0 0
    %289 = vmatpush1.bf16.msra.mxu0 0
    %290 = vmatprep.subr.bf16.mxu0 0
    %291 = vmatpush1.bf16.msra.mxu0 0
    %292 = vmatprep.subr.bf16.mxu0 0
    %293 = vmatpush1.bf16.msra.mxu0 0
    %294 = vmatprep.subr.bf16.mxu0 0
    %295 = vmatpush1.bf16.msra.mxu0 0
    %296 = vmatprep.subr.bf16.mxu0 0
    %297 = vmatpush1.bf16.msra.mxu0 0
    %298 = vmatprep.mubr.bf16.mxu0 0
    %299 = vmatmul.mubr.bf16.gmra.mrb[0].mxu0 %v194
    %v300 = vpop.f32.mrb[0].mxu0
    %v301 = vadd.f32 %v216, %v300
    %v302 = vpop.f32.mrb[0].mxu0
    %v303 = vpop.f32.mrb[0].mxu0
    %v304 = vpop.f32.mrb[0].mxu0
    %305 = vdwg.mxu0
    %v306 = vmax.f32 %v301, 0.0
    %v307 = vadd.f32 %v193, %v306
    %v308 = vpack.c.bf16 %v307, %v307
    %s309 = scalar_lea.vmem [#allocation7], 64
    %v310 = vld [vmem:[%s309] sm:$0xf]
    %v311 = vld [vmem:[%s309 + $0x4] sm:$0xf]
    %v312 = vld [vmem:[%s309 + $0x8] sm:$0xf]
    %v313 = vld [vmem:[%s309 + $0xc] sm:$0xf]
    %v314 = vld [vmem:[%s309 + $0x10] sm:$0xf]
    %v315 = vld [vmem:[%s309 + $0x14] sm:$0xf]
    %v316 = vld [vmem:[%s309 + $0x18] sm:$0xf]
    %v317 = vld [vmem:[%s309 + $0x1c] sm:$0xf]
    %v318 = vld [vmem:[%s309 + $0x20] sm:$0xf]
    %v319 = vld [vmem:[%s309 + $0x24] sm:$0xf]
    %v320 = vld [vmem:[%s309 + $0x28] sm:$0xf]
    %v321 = vld [vmem:[%s309 + $0x2c] sm:$0xf]
    %v322 = vld [vmem:[%s309 + $0x30] sm:$0xf]
    %v323 = vld [vmem:[%s309 + $0x34] sm:$0xf]
    %v324 = vld [vmem:[%s309 + $0x38] sm:$0xf]
    %v325 = vld [vmem:[%s309 + $0x3c] sm:$0xf]
    %s326 = scalar_lea.vmem %s4, 1
    %v327 = vld [vmem:[%s326] sm:$0x1]
    %v329 = vlaneseq
    %v330 = vshrl.u32 %v329, 7
    %v331 = vsub.s32 0, %v330
    %v332 = vrot.slane %v327, %v331
    %v350 = vunpack.c.l.b16 %v310
    %v351 = vunpack.c.l.b16 %v311
    %v352 = vunpack.c.l.b16 %v312
    %v353 = vunpack.c.l.b16 %v313
    %v354 = vunpack.c.l.b16 %v314
    %v355 = vunpack.c.l.b16 %v315
    %v356 = vunpack.c.l.b16 %v316
    %v357 = vunpack.c.l.b16 %v317
    %v358 = vunpack.c.l.b16 %v318
    %v359 = vunpack.c.l.b16 %v319
    %v360 = vunpack.c.l.b16 %v320
    %v361 = vunpack.c.l.b16 %v321
    %v362 = vunpack.c.l.b16 %v322
    %v363 = vunpack.c.l.b16 %v323
    %v364 = vunpack.c.l.b16 %v324
    %v365 = vunpack.c.l.b16 %v325
    %v366 = vpack.c.b16 %v351, %v350
    %v367 = vpack.c.b16 %v353, %v352
    %v368 = vpack.c.b16 %v355, %v354
    %v369 = vpack.c.b16 %v357, %v356
    %v370 = vpack.c.b16 %v359, %v358
    %v371 = vpack.c.b16 %v361, %v360
    %v372 = vpack.c.b16 %v363, %v362
    %v373 = vpack.c.b16 %v365, %v364
    %382 = vmatprep.subr.bf16.mxu0 0
    %383 = vmatpush1.bf16.msra.mxu0 %v366
    %384 = vmatprep.subr.bf16.mxu0 0
    %385 = vmatpush1.bf16.msra.mxu0 %v367
    %386 = vmatprep.subr.bf16.mxu0 0
    %387 = vmatpush1.bf16.msra.mxu0 %v368
    %388 = vmatprep.subr.bf16.mxu0 0
    %389 = vmatpush1.bf16.msra.mxu0 %v369
    %390 = vmatprep.subr.bf16.mxu0 0
    %391 = vmatpush1.bf16.msra.mxu0 %v370
    %392 = vmatprep.subr.bf16.mxu0 0
    %393 = vmatpush1.bf16.msra.mxu0 %v371
    %394 = vmatprep.subr.bf16.mxu0 0
    %395 = vmatpush1.bf16.msra.mxu0 %v372
    %396 = vmatprep.subr.bf16.mxu0 0
    %397 = vmatpush1.bf16.msra.mxu0 %v373
    %398 = vmatprep.subr.bf16.mxu0 0
    %399 = vmatpush1.bf16.msra.mxu0 0
    %400 = vmatprep.subr.bf16.mxu0 0
    %401 = vmatpush1.bf16.msra.mxu0 0
    %402 = vmatprep.subr.bf16.mxu0 0
    %403 = vmatpush1.bf16.msra.mxu0 0
    %404 = vmatprep.subr.bf16.mxu0 0
    %405 = vmatpush1.bf16.msra.mxu0 0
    %406 = vmatprep.subr.bf16.mxu0 0
    %407 = vmatpush1.bf16.msra.mxu0 0
    %408 = vmatprep.subr.bf16.mxu0 0
    %409 = vmatpush1.bf16.msra.mxu0 0
    %410 = vmatprep.subr.bf16.mxu0 0
    %411 = vmatpush1.bf16.msra.mxu0 0
    %412 = vmatprep.subr.bf16.mxu0 0
    %413 = vmatpush1.bf16.msra.mxu0 0
    %414 = vmatprep.mubr.bf16.mxu0 0
    %415 = vmatmul.mubr.bf16.gmra.mrb[0].mxu0 %v308
    %v416 = vpop.f32.mrb[0].mxu0
    %v417 = vadd.f32 %v332, %v416
    %v418 = vpop.f32.mrb[0].mxu0
    %v419 = vpop.f32.mrb[0].mxu0
    %v420 = vpop.f32.mrb[0].mxu0
    %421 = vdwg.mxu0
    %v422 = vmax.f32 %v417, 0.0
    %v423 = vadd.f32 %v307, %v422
    %v424 = vpack.c.bf16 %v423, %v423
    %s425 = scalar_lea.vmem [#allocation7], 128
    %v426 = vld [vmem:[%s425] sm:$0xf]
    %v427 = vld [vmem:[%s425 + $0x4] sm:$0xf]
    %v428 = vld [vmem:[%s425 + $0x8] sm:$0xf]
    %v429 = vld [vmem:[%s425 + $0xc] sm:$0xf]
    %v430 = vld [vmem:[%s425 + $0x10] sm:$0xf]
    %v431 = vld [vmem:[%s425 + $0x14] sm:$0xf]
    %v432 = vld [vmem:[%s425 + $0x18] sm:$0xf]
    %v433 = vld [vmem:[%s425 + $0x1c] sm:$0xf]
    %v434 = vld [vmem:[%s425 + $0x20] sm:$0xf]
    %v435 = vld [vmem:[%s425 + $0x24] sm:$0xf]
    %v436 = vld [vmem:[%s425 + $0x28] sm:$0xf]
    %v437 = vld [vmem:[%s425 + $0x2c] sm:$0xf]
    %v438 = vld [vmem:[%s425 + $0x30] sm:$0xf]
    %v439 = vld [vmem:[%s425 + $0x34] sm:$0xf]
    %v440 = vld [vmem:[%s425 + $0x38] sm:$0xf]
    %v441 = vld [vmem:[%s425 + $0x3c] sm:$0xf]
    %s442 = scalar_lea.vmem %s4, 2
    %v443 = vld [vmem:[%s442] sm:$0x1]
    %v445 = vlaneseq
    %v446 = vshrl.u32 %v445, 7
    %v447 = vsub.s32 0, %v446
    %v448 = vrot.slane %v443, %v447
    %v466 = vunpack.c.l.b16 %v426
    %v467 = vunpack.c.l.b16 %v427
    %v468 = vunpack.c.l.b16 %v428
    %v469 = vunpack.c.l.b16 %v429
    %v470 = vunpack.c.l.b16 %v430
    %v471 = vunpack.c.l.b16 %v431
    %v472 = vunpack.c.l.b16 %v432
    %v473 = vunpack.c.l.b16 %v433
    %v474 = vunpack.c.l.b16 %v434
    %v475 = vunpack.c.l.b16 %v435
    %v476 = vunpack.c.l.b16 %v436
    %v477 = vunpack.c.l.b16 %v437
    %v478 = vunpack.c.l.b16 %v438
    %v479 = vunpack.c.l.b16 %v439
    %v480 = vunpack.c.l.b16 %v440
    %v481 = vunpack.c.l.b16 %v441
    %v482 = vpack.c.b16 %v467, %v466
    %v483 = vpack.c.b16 %v469, %v468
    %v484 = vpack.c.b16 %v471, %v470
    %v485 = vpack.c.b16 %v473, %v472
    %v486 = vpack.c.b16 %v475, %v474
    %v487 = vpack.c.b16 %v477, %v476
    %v488 = vpack.c.b16 %v479, %v478
    %v489 = vpack.c.b16 %v481, %v480
    %498 = vmatprep.subr.bf16.mxu0 0
    %499 = vmatpush1.bf16.msra.mxu0 %v482
    %500 = vmatprep.subr.bf16.mxu0 0
    %501 = vmatpush1.bf16.msra.mxu0 %v483
    %502 = vmatprep.subr.bf16.mxu0 0
    %503 = vmatpush1.bf16.msra.mxu0 %v484
    %504 = vmatprep.subr.bf16.mxu0 0
    %505 = vmatpush1.bf16.msra.mxu0 %v485
    %506 = vmatprep.subr.bf16.mxu0 0
    %507 = vmatpush1.bf16.msra.mxu0 %v486
    %508 = vmatprep.subr.bf16.mxu0 0
    %509 = vmatpush1.bf16.msra.mxu0 %v487
    %510 = vmatprep.subr.bf16.mxu0 0
    %511 = vmatpush1.bf16.msra.mxu0 %v488
    %512 = vmatprep.subr.bf16.mxu0 0
    %513 = vmatpush1.bf16.msra.mxu0 %v489
    %514 = vmatprep.subr.bf16.mxu0 0
    %515 = vmatpush1.bf16.msra.mxu0 0
    %516 = vmatprep.subr.bf16.mxu0 0
    %517 = vmatpush1.bf16.msra.mxu0 0
    %518 = vmatprep.subr.bf16.mxu0 0
    %519 = vmatpush1.bf16.msra.mxu0 0
    %520 = vmatprep.subr.bf16.mxu0 0
    %521 = vmatpush1.bf16.msra.mxu0 0
    %522 = vmatprep.subr.bf16.mxu0 0
    %523 = vmatpush1.bf16.msra.mxu0 0
    %524 = vmatprep.subr.bf16.mxu0 0
    %525 = vmatpush1.bf16.msra.mxu0 0
    %526 = vmatprep.subr.bf16.mxu0 0
    %527 = vmatpush1.bf16.msra.mxu0 0
    %528 = vmatprep.subr.bf16.mxu0 0
    %529 = vmatpush1.bf16.msra.mxu0 0
    %530 = vmatprep.mubr.bf16.mxu0 0
    %531 = vmatmul.mubr.bf16.gmra.mrb[0].mxu0 %v424
    %v532 = vpop.f32.mrb[0].mxu0
    %v533 = vadd.f32 %v448, %v532
    %v534 = vpop.f32.mrb[0].mxu0
    %v535 = vpop.f32.mrb[0].mxu0
    %v536 = vpop.f32.mrb[0].mxu0
    %537 = vdwg.mxu0
    %v538 = vmax.f32 %v533, 0.0
    %v539 = vadd.f32 %v423, %v538
    %v540 = vpack.c.bf16 %v539, %v539
    %s541 = scalar_lea.vmem [#allocation7], 192
    %v542 = vld [vmem:[%s541] sm:$0xf]
    %v543 = vld [vmem:[%s541 + $0x4] sm:$0xf]
    %v544 = vld [vmem:[%s541 + $0x8] sm:$0xf]
    %v545 = vld [vmem:[%s541 + $0xc] sm:$0xf]
    %v546 = vld [vmem:[%s541 + $0x10] sm:$0xf]
    %v547 = vld [vmem:[%s541 + $0x14] sm:$0xf]
    %v548 = vld [vmem:[%s541 + $0x18] sm:$0xf]
    %v549 = vld [vmem:[%s541 + $0x1c] sm:$0xf]
    %v550 = vld [vmem:[%s541 + $0x20] sm:$0xf]
    %v551 = vld [vmem:[%s541 + $0x24] sm:$0xf]
    %v552 = vld [vmem:[%s541 + $0x28] sm:$0xf]
    %v553 = vld [vmem:[%s541 + $0x2c] sm:$0xf]
    %v554 = vld [vmem:[%s541 + $0x30] sm:$0xf]
    %v555 = vld [vmem:[%s541 + $0x34] sm:$0xf]
    %v556 = vld [vmem:[%s541 + $0x38] sm:$0xf]
    %v557 = vld [vmem:[%s541 + $0x3c] sm:$0xf]
    %s558 = scalar_lea.vmem %s4, 3
    %v559 = vld [vmem:[%s558] sm:$0x1]
    %v561 = vlaneseq
    %v562 = vshrl.u32 %v561, 7
    %v563 = vsub.s32 0, %v562
    %v564 = vrot.slane %v559, %v563
    %v582 = vunpack.c.l.b16 %v542
    %v583 = vunpack.c.l.b16 %v543
    %v584 = vunpack.c.l.b16 %v544
    %v585 = vunpack.c.l.b16 %v545
    %v586 = vunpack.c.l.b16 %v546
    %v587 = vunpack.c.l.b16 %v547
    %v588 = vunpack.c.l.b16 %v548
    %v589 = vunpack.c.l.b16 %v549
    %v590 = vunpack.c.l.b16 %v550
    %v591 = vunpack.c.l.b16 %v551
    %v592 = vunpack.c.l.b16 %v552
    %v593 = vunpack.c.l.b16 %v553
    %v594 = vunpack.c.l.b16 %v554
    %v595 = vunpack.c.l.b16 %v555
    %v596 = vunpack.c.l.b16 %v556
    %v597 = vunpack.c.l.b16 %v557
    %v598 = vpack.c.b16 %v583, %v582
    %v599 = vpack.c.b16 %v585, %v584
    %v600 = vpack.c.b16 %v587, %v586
    %v601 = vpack.c.b16 %v589, %v588
    %v602 = vpack.c.b16 %v591, %v590
    %v603 = vpack.c.b16 %v593, %v592
    %v604 = vpack.c.b16 %v595, %v594
    %v605 = vpack.c.b16 %v597, %v596
    %614 = vmatprep.subr.bf16.mxu0 0
    %615 = vmatpush1.bf16.msra.mxu0 %v598
    %616 = vmatprep.subr.bf16.mxu0 0
    %617 = vmatpush1.bf16.msra.mxu0 %v599
    %618 = vmatprep.subr.bf16.mxu0 0
    %619 = vmatpush1.bf16.msra.mxu0 %v600
    %620 = vmatprep.subr.bf16.mxu0 0
    %621 = vmatpush1.bf16.msra.mxu0 %v601
    %622 = vmatprep.subr.bf16.mxu0 0
    %623 = vmatpush1.bf16.msra.mxu0 %v602
    %624 = vmatprep.subr.bf16.mxu0 0
    %625 = vmatpush1.bf16.msra.mxu0 %v603
    %626 = vmatprep.subr.bf16.mxu0 0
    %627 = vmatpush1.bf16.msra.mxu0 %v604
    %628 = vmatprep.subr.bf16.mxu0 0
    %629 = vmatpush1.bf16.msra.mxu0 %v605
    %630 = vmatprep.subr.bf16.mxu0 0
    %631 = vmatpush1.bf16.msra.mxu0 0
    %632 = vmatprep.subr.bf16.mxu0 0
    %633 = vmatpush1.bf16.msra.mxu0 0
    %634 = vmatprep.subr.bf16.mxu0 0
    %635 = vmatpush1.bf16.msra.mxu0 0
    %636 = vmatprep.subr.bf16.mxu0 0
    %637 = vmatpush1.bf16.msra.mxu0 0
    %638 = vmatprep.subr.bf16.mxu0 0
    %639 = vmatpush1.bf16.msra.mxu0 0
    %640 = vmatprep.subr.bf16.mxu0 0
    %641 = vmatpush1.bf16.msra.mxu0 0
    %642 = vmatprep.subr.bf16.mxu0 0
    %643 = vmatpush1.bf16.msra.mxu0 0
    %644 = vmatprep.subr.bf16.mxu0 0
    %645 = vmatpush1.bf16.msra.mxu0 0
    %646 = vmatprep.mubr.bf16.mxu0 0
    %647 = vmatmul.mubr.bf16.gmra.mrb[0].mxu0 %v540
    %v648 = vpop.f32.mrb[0].mxu0
    %v649 = vadd.f32 %v564, %v648
    %v650 = vpop.f32.mrb[0].mxu0
    %v651 = vpop.f32.mrb[0].mxu0
    %v652 = vpop.f32.mrb[0].mxu0
    %653 = vdwg.mxu0
    %v654 = vmax.f32 %v649, 0.0
    %v655 = vadd.f32 %v539, %v654
    %v656 = vpack.c.bf16 %v655, %v655
    %v657 = vld [vmem:[#allocation8] sm:$0xf]
    %v658 = vld [vmem:[#allocation8 + $0x4] sm:$0xf]
    %v659 = vld [vmem:[#allocation8 + $0x8] sm:$0xf]
    %v660 = vld [vmem:[#allocation8 + $0xc] sm:$0xf]
    %v661 = vld [vmem:[#allocation8 + $0x10] sm:$0xf]
    %v662 = vld [vmem:[#allocation8 + $0x14] sm:$0xf]
    %v663 = vld [vmem:[#allocation8 + $0x18] sm:$0xf]
    %v664 = vld [vmem:[#allocation8 + $0x1c] sm:$0xf]
    %v665 = vld [vmem:[#allocation8 + $0x20] sm:$0xf]
    %v666 = vld [vmem:[#allocation8 + $0x24] sm:$0xf]
    %v667 = vld [vmem:[#allocation8 + $0x28] sm:$0xf]
    %v668 = vld [vmem:[#allocation8 + $0x2c] sm:$0xf]
    %v669 = vld [vmem:[#allocation8 + $0x30] sm:$0xf]
    %v670 = vld [vmem:[#allocation8 + $0x34] sm:$0xf]
    %v671 = vld [vmem:[#allocation8 + $0x38] sm:$0xf]
    %v672 = vld [vmem:[#allocation8 + $0x3c] sm:$0xf]
    %v673 = vld [vmem:[%s6] sm:$0x1]
    %v675 = vlaneseq
    %v676 = vshrl.u32 %v675, 7
    %v677 = vsub.s32 0, %v676
    %v678 = vrot.slane %v673, %v677
    %v696 = vunpack.c.l.b16 %v657
    %v697 = vunpack.c.l.b16 %v658
    %v698 = vunpack.c.l.b16 %v659
    %v699 = vunpack.c.l.b16 %v660
    %v700 = vunpack.c.l.b16 %v661
    %v701 = vunpack.c.l.b16 %v662
    %v702 = vunpack.c.l.b16 %v663
    %v703 = vunpack.c.l.b16 %v664
    %v704 = vunpack.c.l.b16 %v665
    %v705 = vunpack.c.l.b16 %v666
    %v706 = vunpack.c.l.b16 %v667
    %v707 = vunpack.c.l.b16 %v668
    %v708 = vunpack.c.l.b16 %v669
    %v709 = vunpack.c.l.b16 %v670
    %v710 = vunpack.c.l.b16 %v671
    %v711 = vunpack.c.l.b16 %v672
    %v712 = vpack.c.b16 %v697, %v696
    %v713 = vpack.c.b16 %v699, %v698
    %v714 = vpack.c.b16 %v701, %v700
    %v715 = vpack.c.b16 %v703, %v702
    %v716 = vpack.c.b16 %v705, %v704
    %v717 = vpack.c.b16 %v707, %v706
    %v718 = vpack.c.b16 %v709, %v708
    %v719 = vpack.c.b16 %v711, %v710
    %728 = vmatprep.subr.bf16.mxu0 0
    %729 = vmatpush1.bf16.msra.mxu0 %v712
    %730 = vmatprep.subr.bf16.mxu0 0
    %731 = vmatpush1.bf16.msra.mxu0 %v713
    %732 = vmatprep.subr.bf16.mxu0 0
    %733 = vmatpush1.bf16.msra.mxu0 %v714
    %734 = vmatprep.subr.bf16.mxu0 0
    %735 = vmatpush1.bf16.msra.mxu0 %v715
    %736 = vmatprep.subr.bf16.mxu0 0
    %737 = vmatpush1.bf16.msra.mxu0 %v716
    %738 = vmatprep.subr.bf16.mxu0 0
    %739 = vmatpush1.bf16.msra.mxu0 %v717
    %740 = vmatprep.subr.bf16.mxu0 0
    %741 = vmatpush1.bf16.msra.mxu0 %v718
    %742 = vmatprep.subr.bf16.mxu0 0
    %743 = vmatpush1.bf16.msra.mxu0 %v719
    %744 = vmatprep.subr.bf16.mxu0 0
    %745 = vmatpush1.bf16.msra.mxu0 0
    %746 = vmatprep.subr.bf16.mxu0 0
    %747 = vmatpush1.bf16.msra.mxu0 0
    %748 = vmatprep.subr.bf16.mxu0 0
    %749 = vmatpush1.bf16.msra.mxu0 0
    %750 = vmatprep.subr.bf16.mxu0 0
    %751 = vmatpush1.bf16.msra.mxu0 0
    %752 = vmatprep.subr.bf16.mxu0 0
    %753 = vmatpush1.bf16.msra.mxu0 0
    %754 = vmatprep.subr.bf16.mxu0 0
    %755 = vmatpush1.bf16.msra.mxu0 0
    %756 = vmatprep.subr.bf16.mxu0 0
    %757 = vmatpush1.bf16.msra.mxu0 0
    %758 = vmatprep.subr.bf16.mxu0 0
    %759 = vmatpush1.bf16.msra.mxu0 0
    %760 = vmatprep.mubr.bf16.mxu0 0
    %761 = vmatmul.mubr.bf16.gmra.mrb[0].mxu0 %v656
    %v762 = vpop.f32.mrb[0].mxu0
    %v763 = vadd.f32 %v678, %v762
    %v764 = vpop.f32.mrb[0].mxu0
    %v765 = vpop.f32.mrb[0].mxu0
    %v766 = vpop.f32.mrb[0].mxu0
    %767 = vdwg.mxu0
    %768 = vst [vmem:[#allocation10] sm:$0xff] %v763
    // Predicated region
    $region46: #{tpu_custom_call.1} parent=1 // pred_check
      _
    $region47: #{tpu_custom_call.1} parent=1 // pred_check_branch
      %770 = sbr.rel (0) target = $region49
    $region48: #{tpu_custom_call.1} parent=1 // pred_region
      %s772 = ssub.s32 128, 128
      %773 = vsyncadd [#allocation4], %s772
      %s775 = sshll.u32 [#allocation10], 4
      %s776 = int_to_ptr.vmem [resolvable:$true] %s775
      %778 = dma.vmem_to_hbm [thread:$0]  %s776, 128, %s7, [#allocation4]
    $region49: #{tpu_custom_call.1} parent=1 // pred_fallthru
      _
    // Predicated region
    $region50: #{tpu_custom_call.1} parent=1 // pred_check
      _
    $region51: #{tpu_custom_call.1} parent=1 // pred_check_branch
      %780 = sbr.rel (0) target = $region53
    $region52: #{tpu_custom_call.1} parent=1 // pred_region
      %781 = dma.done [#allocation4], 128
    $region53: #{tpu_custom_call.1} parent=1 // pred_fallthru
      _
    %782 = vsyncpa [#allocation3], 1
    %783 = vsyncpa [#allocation6], 1
    %784 = vsyncpa [#allocation9], 1
    %785 = vsyncpa [#allocation4], 1

</llo_original>
